<compile_context>
chip_gen: v6e
topology: v6e:2x2x1
jax: 0.10.0
libtpu: 0.0.40
codegen_flags: <defaults>
</compile_context>

<pallas_src>
import math

import jax
import jax.numpy as jnp
from jax.experimental import pallas as pl
from jax.experimental.pallas import tpu as pltpu


def _eca_kernel(x_ref, pt_ref, e_ref, w2_ref, bias_ref, o_ref):
    # x_ref    : (C, H*W)  f32  -- one batch element, NCHW with (H, W) flattened on lanes
    # pt_ref   : (H*W, H)  f32  -- fused (mean-pool over (C,W)) @ (Conv1d-over-H Toeplitz)
    # e_ref    : (H, H*W)  f32  -- one-hot expand: E[h, h*W + w] = 1
    # w2_ref   : (O, C)    f32  -- 1x1 Conv2d weight
    # bias_ref : (O, 1)    f32  -- 1x1 Conv2d bias
    # o_ref    : (O, H*W)  f32
    x = x_ref[...]                                                       # (C, HW)

    # AdaptiveAvgPool2d((1,1)) over the permuted tensor == mean over (C, W) per h,
    # then Conv1d(1,1,k, zero pad, no bias) along H; both folded into one matmul.
    colsum = jnp.sum(x, axis=0, keepdims=True)                           # (1, HW) XLU
    conv = jnp.dot(colsum, pt_ref[...],
                   preferred_element_type=jnp.float32)                   # (1, H)
    s = jax.nn.sigmoid(conv)                                             # (1, H)  EUP

    # Expand gate back onto the lane axis: s_wide[0, h*W + w] = s[0, h].
    s_wide = jnp.dot(s, e_ref[...], preferred_element_type=jnp.float32)  # (1, HW)

    # 1x1 Conv2d(C -> O): single lane-dense MXU matmul, output already NCHW-flat.
    y = jnp.dot(w2_ref[...], x, preferred_element_type=jnp.float32)      # (O, HW)

    # Gate after the (linear) 1x1 conv -- exact; bias added last (to_out runs
    # after the multiply in the PyTorch module).
    o_ref[...] = y * s_wide + bias_ref[...]


def ecanet_h(x_nchw, conv1d_w, conv2d_w, conv2d_b):
    """x_nchw: (B, C, H, W); conv1d_w: (1,1,k); conv2d_w: (O,C,1,1); conv2d_b: (O,)."""
    B, C, H, W = x_nchw.shape
    O = conv2d_w.shape[0]
    k = conv1d_w.shape[-1]
    p = (k - 1) // 2
    HW = H * W

    # Zero-cost layout: (B, C, H, W) -> (B, C, H*W) is a contiguous reshape.
    x_flat = x_nchw.astype(jnp.float32).reshape(B, C, HW)

    # Banded Toeplitz matrix implementing the zero-padded cross-correlation over H:
    # conv[h] = sum_i pooled[i] * T[i, h],  T[i, h] = w1[i - h + p] when |i - h| <= p.
    w1 = conv1d_w.reshape(k).astype(jnp.float32)
    ii = jnp.arange(H)[:, None]
    jj = jnp.arange(H)[None, :]
    d = ii - jj + p
    t_mat = jnp.where((d >= 0) & (d < k), w1[jnp.clip(d, 0, k - 1)], 0.0)

    # Pooling matrix P (HW, H): P[h*W + w, h] = 1/(C*W); fuse with T -> one matmul.
    hw_to_h = jnp.arange(HW) // W
    p_mat = (hw_to_h[:, None] == jnp.arange(H)[None, :]).astype(jnp.float32) / (C * W)
    pt_mat = (p_mat @ t_mat).astype(jnp.float32)                          # (HW, H)

    # Expand matrix E (H, HW): E[h, h*W + w] = 1.
    e_mat = (jnp.arange(H)[:, None] == hw_to_h[None, :]).astype(jnp.float32)

    w2 = conv2d_w.reshape(O, C).astype(jnp.float32)
    bias = conv2d_b.astype(jnp.float32).reshape(O, 1)

    out = pl.pallas_call(
        _eca_kernel,
        out_shape=jax.ShapeDtypeStruct((B, O, HW), jnp.float32),
        grid=(B,),
        in_specs=[
            pl.BlockSpec((None, C, HW), lambda b: (b, 0, 0)),   # x: one batch / step
            pl.BlockSpec((HW, H), lambda b: (0, 0)),            # fused pool+conv1d
            pl.BlockSpec((H, HW), lambda b: (0, 0)),            # gate expand
            pl.BlockSpec((O, C), lambda b: (0, 0)),             # 1x1 conv weight
            pl.BlockSpec((O, 1), lambda b: (0, 0)),             # 1x1 conv bias
        ],
        out_specs=pl.BlockSpec((None, O, HW), lambda b: (b, 0, 0)),
        compiler_params=pltpu.CompilerParams(dimension_semantics=("parallel",)),
    )(x_flat, pt_mat, e_mat, w2, bias)

    # Zero-cost: (B, O, H*W) -> (B, O, H, W).
    return out.reshape(B, O, H, W)


def ecanet_h_ref(x, conv1d_w, conv2d_w, conv2d_b):
    """Pure-JAX f32 reference mirroring the PyTorch forward."""
    B, C, H, W = x.shape
    O = conv2d_w.shape[0]
    k = conv1d_w.shape[-1]
    p = (k - 1) // 2
    xp = jnp.transpose(x, (0, 2, 1, 3))                     # (B, H, C, W)
    pooled = jnp.mean(xp, axis=(2, 3))                      # (B, H)
    padded = jnp.pad(pooled, ((0, 0), (p, p)))
    w1 = conv1d_w.reshape(-1)
    conv = sum(w1[j] * padded[:, j:j + H] for j in range(k))
    s = jax.nn.sigmoid(conv)                                # (B, H)
    y = xp * s[:, :, None, None]                            # (B, H, C, W)
    y = jnp.transpose(y, (0, 2, 1, 3))                      # (B, C, H, W)
    out = jnp.einsum('oc,bchw->bohw', conv2d_w.reshape(O, C), y)
    return out + conv2d_b[None, :, None, None]


if __name__ == "__main__":
    key = jax.random.PRNGKey(0)
    B, C, H, W = 2, 16, 16, 16
    O = 8
    gamma, b_const = 2, 1

    # kernel_size exactly as in ECANetH.__init__ (C=16 -> k=3, padding=1)
    k = int(abs((math.log(C, 2) + b_const) / gamma))
    k = k if k % 2 else k + 1

    kx, k1, k2, k3 = jax.random.split(key, 4)
    x = jax.random.normal(kx, (B, C, H, W), jnp.float32)
    conv1d_w = jax.random.normal(k1, (1, 1, k), jnp.float32) * 0.5
    conv2d_w = jax.random.normal(k2, (O, C, 1, 1), jnp.float32) / math.sqrt(C)
    conv2d_b = jax.random.normal(k3, (O,), jnp.float32) * 0.1

    out = ecanet_h(x, conv1d_w, conv2d_w, conv2d_b)
    out = jax.block_until_ready(out)

    ref = ecanet_h_ref(x, conv1d_w, conv2d_w, conv2d_b)
    assert out.shape == (B, O, H, W), out.shape
    err = float(jnp.max(jnp.abs(out - ref)))
    assert jnp.allclose(out, ref, rtol=1e-3, atol=1e-3), err
    print("KERNEL_OK")
</pallas_src>

<mosaic_0001>
module attributes {stable_mosaic.version = 11 : i64} {
  func.func @_eca_kernel(%arg0: i32, %arg1: memref<1x16x256xf32, #tpu.memory_space<vmem>>, %arg2: memref<256x16xf32, #tpu.memory_space<vmem>>, %arg3: memref<16x256xf32, #tpu.memory_space<vmem>>, %arg4: memref<8x16xf32, #tpu.memory_space<vmem>>, %arg5: memref<8x1xf32, #tpu.memory_space<vmem>>, %arg6: memref<1x8x256xf32, #tpu.memory_space<vmem>>) attributes {dimension_semantics = [#tpu.dimension_semantics<parallel>], iteration_bounds = array<i64: 2>, scalar_prefetch = 0 : i64, scratch_operands = 0 : i64, tpu.core_type = #tpu.core_type<tc>, window_params = [{transform_indices = @transform_0, window_bounds = array<i64: 1, 16, 256>}, {pipeline_mode = #tpu.pipeline_mode<synchronous>, transform_indices = @transform_1, window_bounds = array<i64: 256, 16>}, {pipeline_mode = #tpu.pipeline_mode<synchronous>, transform_indices = @transform_2, window_bounds = array<i64: 16, 256>}, {pipeline_mode = #tpu.pipeline_mode<synchronous>, transform_indices = @transform_3, window_bounds = array<i64: 8, 16>}, {pipeline_mode = #tpu.pipeline_mode<synchronous>, transform_indices = @transform_4, window_bounds = array<i64: 8, 1>}, {transform_indices = @transform_5, window_bounds = array<i64: 1, 8, 256>}]} {
    %c0 = arith.constant 0 : index
    %c0_0 = arith.constant 0 : index
    %c0_1 = arith.constant 0 : index
    %0 = vector.load %arg1[%c0, %c0_0, %c0_1] : memref<1x16x256xf32, #tpu.memory_space<vmem>>, vector<1x16x256xf32>
    %1 = vector.shape_cast %0 : vector<1x16x256xf32> to vector<16x256xf32>
    %cst = arith.constant dense<0.000000e+00> : vector<256xf32>
    %2 = vector.multi_reduction <add>, %1, %cst [0] : vector<16x256xf32> to vector<256xf32>
    %3 = vector.shape_cast %2 : vector<256xf32> to vector<1x256xf32>
    %c0_2 = arith.constant 0 : index
    %c0_3 = arith.constant 0 : index
    %4 = vector.load %arg2[%c0_2, %c0_3] : memref<256x16xf32, #tpu.memory_space<vmem>>, vector<256x16xf32>
    %cst_4 = arith.constant dense<0.000000e+00> : vector<1x16xf32>
    %5 = tpu.matmul %3, %4, %cst_4 {dimension_numbers = #tpu.dot_dimension_numbers<[1], [0], [0], [1], [0, 0, 1, 1], [], []>} : vector<1x256xf32>, vector<256x16xf32>, vector<1x16xf32> -> vector<1x16xf32>
    %6 = arith.negf %5 : vector<1x16xf32>
    %7 = math.exp %6 : vector<1x16xf32>
    %cst_5 = arith.constant 1.000000e+00 : f32
    %8 = vector.broadcast %cst_5 : f32 to vector<1x16xf32>
    %9 = arith.addf %8, %7 : vector<1x16xf32>
    %10 = arith.divf %8, %9 : vector<1x16xf32>
    %c0_6 = arith.constant 0 : index
    %c0_7 = arith.constant 0 : index
    %11 = vector.load %arg3[%c0_6, %c0_7] : memref<16x256xf32, #tpu.memory_space<vmem>>, vector<16x256xf32>
    %cst_8 = arith.constant dense<0.000000e+00> : vector<1x256xf32>
    %12 = tpu.matmul %10, %11, %cst_8 {dimension_numbers = #tpu.dot_dimension_numbers<[1], [0], [0], [1], [0, 0, 1, 1], [], []>} : vector<1x16xf32>, vector<16x256xf32>, vector<1x256xf32> -> vector<1x256xf32>
    %c0_9 = arith.constant 0 : index
    %c0_10 = arith.constant 0 : index
    %13 = vector.load %arg4[%c0_9, %c0_10] : memref<8x16xf32, #tpu.memory_space<vmem>>, vector<8x16xf32>
    %cst_11 = arith.constant dense<0.000000e+00> : vector<8x256xf32>
    %14 = tpu.matmul %13, %1, %cst_11 {dimension_numbers = #tpu.dot_dimension_numbers<[1], [0], [0], [1], [0, 0, 1, 1], [], []>} : vector<8x16xf32>, vector<16x256xf32>, vector<8x256xf32> -> vector<8x256xf32>
    %15 = vector.broadcast %12 : vector<1x256xf32> to vector<8x256xf32>
    %16 = arith.mulf %14, %15 : vector<8x256xf32>
    %c0_12 = arith.constant 0 : index
    %c0_13 = arith.constant 0 : index
    %17 = vector.load %arg5[%c0_12, %c0_13] : memref<8x1xf32, #tpu.memory_space<vmem>>, vector<8x1xf32>
    %18 = vector.broadcast %17 : vector<8x1xf32> to vector<8x256xf32>
    %19 = arith.addf %16, %18 : vector<8x256xf32>
    %c0_14 = arith.constant 0 : index
    %c0_15 = arith.constant 0 : index
    %c0_16 = arith.constant 0 : index
    %20 = vector.load %arg6[%c0_14, %c0_15, %c0_16] : memref<1x8x256xf32, #tpu.memory_space<vmem>>, vector<1x8x256xf32>
    %21 = vector.shape_cast %20 : vector<1x8x256xf32> to vector<8x256xf32>
    %22 = vector.shape_cast %19 : vector<8x256xf32> to vector<1x8x256xf32>
    tpu.vector_store %arg6[%c0_14, %c0_15, %c0_16], %22 {strides = array<i32>} : memref<1x8x256xf32, #tpu.memory_space<vmem>>, vector<1x8x256xf32>,
    return
  }
  func.func @transform_0(%arg0: i32) -> (i32, i32, i32) {
    %c0_i32 = arith.constant 0 : i32
    %c0_i32_0 = arith.constant 0 : i32
    %c0_i32_1 = arith.constant 0 : i32
    return %arg0, %c0_i32, %c0_i32_0 : i32, i32, i32
  }
  func.func @transform_1(%arg0: i32) -> (i32, i32) {
    %c0_i32 = arith.constant 0 : i32
    %c0_i32_0 = arith.constant 0 : i32
    %c0_i32_1 = arith.constant 0 : i32
    return %c0_i32, %c0_i32_0 : i32, i32
  }
  func.func @transform_2(%arg0: i32) -> (i32, i32) {
    %c0_i32 = arith.constant 0 : i32
    %c0_i32_0 = arith.constant 0 : i32
    %c0_i32_1 = arith.constant 0 : i32
    return %c0_i32, %c0_i32_0 : i32, i32
  }
  func.func @transform_3(%arg0: i32) -> (i32, i32) {
    %c0_i32 = arith.constant 0 : i32
    %c0_i32_0 = arith.constant 0 : i32
    %c0_i32_1 = arith.constant 0 : i32
    return %c0_i32, %c0_i32_0 : i32, i32
  }
  func.func @transform_4(%arg0: i32) -> (i32, i32) {
    %c0_i32 = arith.constant 0 : i32
    %c0_i32_0 = arith.constant 0 : i32
    %c0_i32_1 = arith.constant 0 : i32
    return %c0_i32, %c0_i32_0 : i32, i32
  }
  func.func @transform_5(%arg0: i32) -> (i32, i32, i32) {
    %c0_i32 = arith.constant 0 : i32
    %c0_i32_0 = arith.constant 0 : i32
    %c0_i32_1 = arith.constant 0 : i32
    return %arg0, %c0_i32, %c0_i32_0 : i32, i32, i32
  }
}

</mosaic_0001>

<llo_original>
// kernel: tpu_custom_call.1
$region0: #{tpu_custom_call.1}
  #allocation0 [shape = 'u32[]', space=smem, size = 0x4, offset = 0x4, fixed_abs, tag = 'smem constant byte address 0x4 - core index']
  #allocation1 [shape = 'u32[144,128]{1,0:T(1,128)}', space=vmem, size = 0x12000, scoped, tag = 'internal scratch']
  %s0 = inlined_call_operand.vmem [shape: f32[2,16,256], index: 0, kind: input, shape index: {}]
  %s1 = inlined_call_operand.vmem [shape: f32[256,16], index: 1, kind: input, shape index: {}]
  %s2 = inlined_call_operand.vmem [shape: f32[16,256], index: 2, kind: input, shape index: {}]
  %s3 = inlined_call_operand.vmem [shape: f32[8,16], index: 3, kind: input, shape index: {}]
  %s4 = inlined_call_operand.vmem [shape: f32[8,1], index: 4, kind: input, shape index: {}]
  %s5 = inlined_call_operand.hbm [shape: f32[2,8,256], index: 5, kind: output, shape index: {}]
  %s6 = sld [smem:[#allocation0]]
  $region53: #{tpu_custom_call.1} parent=0
    _
  %s8 = ssub.s32 1, %s6
  %s9 = scalar_select 0, %s8, %s6
  $region1: #{tpu_custom_call.1} parent=0
    #allocation2 [shape = 'u8[16384]{0}', space=vmem, size = 0x4000, scoped, tag = 'output window, operand 0']
    #allocation3 [shape = 's32[2]{0}', space=sflag, size = 0x8, scoped, tag = 'scoped memory for tpu_custom_call.1']
    %10 = vsyncpa [#allocation3], 0
    %s11 = scalar_lea.sflag [#allocation3], 1
    %12 = vsyncpa %s11, 0
    loop: start=0, step=1, limit=4
    $region2: #{tpu_custom_call.1} parent=1 // loop_pre_header
      _
    $region3: #{tpu_custom_call.1} parent=1 // loop_header
      %s14 = sphi 0, %s18
      %p15 = scmp.ge.s32.totalorder %s14, 4
      %s24 = sphi 0, %s26
      %s27 = sphi 0, %s24
      %s28 = sphi 0, %s27
      %s44 = sphi 0, %s28
      %s48 = sphi 0, %s48
      %s50 = sphi 0, %s48
      %s51 = sphi 0, %s50
      %s65 = sphi 0, %s51
      %s69 = sphi 0, %s69
      %s71 = sphi 0, %s69
      %s72 = sphi 0, %s71
      %s86 = sphi 0, %s72
      %s90 = sphi 0, %s90
      %s92 = sphi 0, %s90
      %s93 = sphi 0, %s92
      %s107 = sphi 0, %s93
      %s111 = sphi 0, %s111
      %s113 = sphi 0, %s111
      %s114 = sphi 0, %s113
      %s128 = sphi 0, %s114
      %s134 = sphi 0, %s136
      %s137 = sphi 0, %s134
      %s138 = sphi 0, %s137
      %s154 = sphi 0, %s138
    $region4: #{tpu_custom_call.1} parent=1 // loop_header_branch
      %17 = sbr.rel (%p15) target = $region8
    $region5: #{tpu_custom_call.1} parent=1 // loop_body
      %s19 = ssub.s32 %s14, 1
      %s20 = ssub.s32 %s14, 2
      %s21 = sadd.s32 %s14, 1
      %s22 = ssub.s32 %s14, %s21
      %p23 = scmp.eq.s32.totalorder %s22, 0
      %s25 = sadd.s32 %s24, 1
      %s26 = scalar_select %p23, %s24, %s25
      %p29 = pneg %p23
      %p30 = scmp.eq.s32.totalorder %s14, 1
      %p31 = por %p29, %p30
      %p32 = scmp.ne.s32.totalorder %s24, %s27
      %p33 = scmp.eq.s32.totalorder %s14, 0
      %p34 = por %p32, %p33
      %p35 = scmp.ne.s32.totalorder %s24, %s27
      %p36 = scmp.eq.s32.totalorder %s19, 1
      %p37 = por %p35, %p36
      %p38 = scmp.ne.s32.totalorder %s27, %s28
      %p39 = scmp.eq.s32.totalorder %s19, 0
      %p40 = por %p38, %p39
      %p41 = scmp.ne.s32.totalorder %s27, %s28
      %p42 = scmp.eq.s32.totalorder %s20, 1
      %p43 = por %p41, %p42
      %p45 = scmp.ne.s32.totalorder %s28, %s44
      %p46 = scmp.eq.s32.totalorder %s20, 0
      %p47 = por %p45, %p46
      %s49 = sadd.s32 %s48, 1
      %p52 = scmp.eq.s32.totalorder %s14, 1
      %p53 = scmp.ne.s32.totalorder %s48, %s50
      %p54 = scmp.eq.s32.totalorder %s14, 0
      %p55 = por %p53, %p54
      %p56 = scmp.ne.s32.totalorder %s48, %s50
      %p57 = scmp.eq.s32.totalorder %s19, 1
      %p58 = por %p56, %p57
      %p59 = scmp.ne.s32.totalorder %s50, %s51
      %p60 = scmp.eq.s32.totalorder %s19, 0
      %p61 = por %p59, %p60
      %p62 = scmp.ne.s32.totalorder %s50, %s51
      %p63 = scmp.eq.s32.totalorder %s20, 1
      %p64 = por %p62, %p63
      %p66 = scmp.ne.s32.totalorder %s51, %s65
      %p67 = scmp.eq.s32.totalorder %s20, 0
      %p68 = por %p66, %p67
      %s70 = sadd.s32 %s69, 1
      %p73 = scmp.eq.s32.totalorder %s14, 1
      %p74 = scmp.ne.s32.totalorder %s69, %s71
      %p75 = scmp.eq.s32.totalorder %s14, 0
      %p76 = por %p74, %p75
      %p77 = scmp.ne.s32.totalorder %s69, %s71
      %p78 = scmp.eq.s32.totalorder %s19, 1
      %p79 = por %p77, %p78
      %p80 = scmp.ne.s32.totalorder %s71, %s72
      %p81 = scmp.eq.s32.totalorder %s19, 0
      %p82 = por %p80, %p81
      %p83 = scmp.ne.s32.totalorder %s71, %s72
      %p84 = scmp.eq.s32.totalorder %s20, 1
      %p85 = por %p83, %p84
      %p87 = scmp.ne.s32.totalorder %s72, %s86
      %p88 = scmp.eq.s32.totalorder %s20, 0
      %p89 = por %p87, %p88
      %s91 = sadd.s32 %s90, 1
      %p94 = scmp.eq.s32.totalorder %s14, 1
      %p95 = scmp.ne.s32.totalorder %s90, %s92
      %p96 = scmp.eq.s32.totalorder %s14, 0
      %p97 = por %p95, %p96
      %p98 = scmp.ne.s32.totalorder %s90, %s92
      %p99 = scmp.eq.s32.totalorder %s19, 1
      %p100 = por %p98, %p99
      %p101 = scmp.ne.s32.totalorder %s92, %s93
      %p102 = scmp.eq.s32.totalorder %s19, 0
      %p103 = por %p101, %p102
      %p104 = scmp.ne.s32.totalorder %s92, %s93
      %p105 = scmp.eq.s32.totalorder %s20, 1
      %p106 = por %p104, %p105
      %p108 = scmp.ne.s32.totalorder %s93, %s107
      %p109 = scmp.eq.s32.totalorder %s20, 0
      %p110 = por %p108, %p109
      %s112 = sadd.s32 %s111, 1
      %p115 = scmp.eq.s32.totalorder %s14, 1
      %p116 = scmp.ne.s32.totalorder %s111, %s113
      %p117 = scmp.eq.s32.totalorder %s14, 0
      %p118 = por %p116, %p117
      %p119 = scmp.ne.s32.totalorder %s111, %s113
      %p120 = scmp.eq.s32.totalorder %s19, 1
      %p121 = por %p119, %p120
      %p122 = scmp.ne.s32.totalorder %s113, %s114
      %p123 = scmp.eq.s32.totalorder %s19, 0
      %p124 = por %p122, %p123
      %p125 = scmp.ne.s32.totalorder %s113, %s114
      %p126 = scmp.eq.s32.totalorder %s20, 1
      %p127 = por %p125, %p126
      %p129 = scmp.ne.s32.totalorder %s114, %s128
      %p130 = scmp.eq.s32.totalorder %s20, 0
      %p131 = por %p129, %p130
      %s132 = ssub.s32 %s14, %s21
      %p133 = scmp.eq.s32.totalorder %s132, 0
      %s135 = sadd.s32 %s134, 1
      %s136 = scalar_select %p133, %s134, %s135
      %p139 = pneg %p133
      %p140 = scmp.eq.s32.totalorder %s14, 1
      %p141 = por %p139, %p140
      %p142 = scmp.ne.s32.totalorder %s134, %s137
      %p143 = scmp.eq.s32.totalorder %s14, 0
      %p144 = por %p142, %p143
      %p145 = scmp.ne.s32.totalorder %s134, %s137
      %p146 = scmp.eq.s32.totalorder %s19, 1
      %p147 = por %p145, %p146
      %p148 = scmp.ne.s32.totalorder %s137, %s138
      %p149 = scmp.eq.s32.totalorder %s19, 0
      %p150 = por %p148, %p149
      %p151 = scmp.ne.s32.totalorder %s137, %s138
      %p152 = scmp.eq.s32.totalorder %s20, 1
      %p153 = por %p151, %p152
      %p155 = scmp.ne.s32.totalorder %s138, %s154
      %p156 = scmp.eq.s32.totalorder %s20, 0
      %p157 = por %p155, %p156
      %p158 = scmp.le.s32.totalorder 1, %s14
      %p159 = scmp.lt.s32.totalorder %s14, 3
      %p160 = pnand %p158, %p159
      %p161 = pneg %p160
      // Predicated region
      $region9: #{tpu_custom_call.1} parent=5 // pred_check
        _
      $region10: #{tpu_custom_call.1} parent=5 // pred_check_branch
        %163 = sbr.rel (%p160) target = $region12
      $region11: #{tpu_custom_call.1} parent=5 // pred_region
        %s164 = ssub.s32 %s14, 1
        // Predicated region
        $region13: #{tpu_custom_call.1} parent=11 // pred_check
          %p165 = pneg %p61
        $region14: #{tpu_custom_call.1} parent=11 // pred_check_branch
          %167 = sbr.rel (%p165) target = $region16
        $region15: #{tpu_custom_call.1} parent=11 // pred_region
          _
        $region16: #{tpu_custom_call.1} parent=11 // pred_fallthru
          _
        // Predicated region
        $region17: #{tpu_custom_call.1} parent=11 // pred_check
          %p168 = pneg %p82
        $region18: #{tpu_custom_call.1} parent=11 // pred_check_branch
          %170 = sbr.rel (%p168) target = $region20
        $region19: #{tpu_custom_call.1} parent=11 // pred_region
          _
        $region20: #{tpu_custom_call.1} parent=11 // pred_fallthru
          _
        // Predicated region
        $region21: #{tpu_custom_call.1} parent=11 // pred_check
          %p171 = pneg %p103
        $region22: #{tpu_custom_call.1} parent=11 // pred_check_branch
          %173 = sbr.rel (%p171) target = $region24
        $region23: #{tpu_custom_call.1} parent=11 // pred_region
          _
        $region24: #{tpu_custom_call.1} parent=11 // pred_fallthru
          _
        // Predicated region
        $region25: #{tpu_custom_call.1} parent=11 // pred_check
          %p174 = pneg %p124
        $region26: #{tpu_custom_call.1} parent=11 // pred_check_branch
          %176 = sbr.rel (%p174) target = $region28
        $region27: #{tpu_custom_call.1} parent=11 // pred_region
          _
        $region28: #{tpu_custom_call.1} parent=11 // pred_fallthru
          _
      $region12: #{tpu_custom_call.1} parent=5 // pred_fallthru
        _
      %p177 = scmp.lt.s32.totalorder %s14, 2
      // Predicated region
      $region29: #{tpu_custom_call.1} parent=5 // pred_check
        %p178 = pneg %p177
      $region30: #{tpu_custom_call.1} parent=5 // pred_check_branch
        %180 = sbr.rel (%p178) target = $region32
      $region31: #{tpu_custom_call.1} parent=5 // pred_region
        // Predicated region
        $region33: #{tpu_custom_call.1} parent=31 // pred_check
          %p181 = pneg %p34
        $region34: #{tpu_custom_call.1} parent=31 // pred_check_branch
          %183 = sbr.rel (%p181) target = $region36
        $region35: #{tpu_custom_call.1} parent=31 // pred_region
          %p184 = scmp.lt.s32.totalorder %s14, 1
          %s185 = scalar_select %p184, %s14, 1
          %s186 = smul.addr %s185, 4
          %s187 = smul.addr %s186, 8
          %s188 = scalar_lea.vmem %s0, %s187
        $region36: #{tpu_custom_call.1} parent=31 // pred_fallthru
          _
      $region32: #{tpu_custom_call.1} parent=5 // pred_fallthru
        _
      %p189 = scmp.le.s32.totalorder 1, %s14
      %p190 = scmp.lt.s32.totalorder %s14, 3
      %p191 = pnand %p189, %p190
      %p192 = pneg %p191
      // Predicated region
      $region37: #{tpu_custom_call.1} parent=5 // pred_check
        _
      $region38: #{tpu_custom_call.1} parent=5 // pred_check_branch
        %194 = sbr.rel (%p191) target = $region40
      $region39: #{tpu_custom_call.1} parent=5 // pred_region
        %s195 = ssub.s32 %s14, 1
        %p196 = scmp.lt.s32.totalorder %s19, 1
        %s197 = scalar_select %p196, %s19, 1
        %s198 = smul.addr %s197, 4
        %s199 = smul.addr %s198, 8
        %s200 = scalar_lea.vmem %s0, %s199
        %p201 = pneg %p40
        %p202 = pneg %p37
        %p203 = pneg %p61
        %p204 = pneg %p58
        %p205 = pneg %p82
        %p206 = pneg %p79
        %p207 = pneg %p103
        %p208 = pneg %p100
        %p209 = pneg %p124
        %p210 = pneg %p121
        %p211 = pneg %p150
        %p212 = pneg %p147
        %s213 = sand.u32 %s137, 1
        %s214 = scalar_lea.sflag [#allocation3], %s213
        %s215 = sand.u32 %s137, 1
        %s216 = smul.addr %s215, 16
        %s217 = scalar_lea.vmem [#allocation2], %s216
        %p218 = scmp.lt.s32.totalorder %s19, 1
        %s219 = scalar_select %p218, %s19, 1
        %s220 = smul.addr %s219, 4
        %s221 = smul.addr %s220, 8
        %s222 = scalar_lea.vmem %s0, %s221
        %v223 = vld [vmem:[%s222] sm:$0xff]
        %v224 = vld [vmem:[%s222 + $0x8] sm:$0xff]
        %v225 = vld [vmem:[%s222 + $0x10] sm:$0xff]
        %v226 = vld [vmem:[%s222 + $0x18] sm:$0xff]
        %v227 = vadd.f32 %v223, %v225
        %v228 = vrot.slane %v227, 4
        %v229 = vadd.f32 %v227, %v228
        %v230 = vrot.slane %v229, 2
        %v231 = vadd.f32 %v229, %v230
        %v232 = vrot.slane %v231, 1
        %v233 = vadd.f32 %v231, %v232
        %v234 = vadd.f32 %v224, %v226
        %v235 = vrot.slane %v234, 4
        %v236 = vadd.f32 %v234, %v235
        %v237 = vrot.slane %v236, 2
        %v238 = vadd.f32 %v236, %v237
        %v239 = vrot.slane %v238, 1
        %v240 = vadd.f32 %v238, %v239
        %v241 = vld [vmem:[%s1] sm:$0xff]
        %v242 = vld [vmem:[%s1 + $0x8] sm:$0xff]
        %v243 = vld [vmem:[%s1 + $0x10] sm:$0xff]
        %v244 = vld [vmem:[%s1 + $0x18] sm:$0xff]
        %v245 = vld [vmem:[%s1 + $0x20] sm:$0xff]
        %v246 = vld [vmem:[%s1 + $0x28] sm:$0xff]
        %v247 = vld [vmem:[%s1 + $0x30] sm:$0xff]
        %v248 = vld [vmem:[%s1 + $0x38] sm:$0xff]
        %v249 = vld [vmem:[%s1 + $0x40] sm:$0xff]
        %v250 = vld [vmem:[%s1 + $0x48] sm:$0xff]
        %v251 = vld [vmem:[%s1 + $0x50] sm:$0xff]
        %v252 = vld [vmem:[%s1 + $0x58] sm:$0xff]
        %v253 = vld [vmem:[%s1 + $0x60] sm:$0xff]
        %v254 = vld [vmem:[%s1 + $0x68] sm:$0xff]
        %v255 = vld [vmem:[%s1 + $0x70] sm:$0xff]
        %v256 = vld [vmem:[%s1 + $0x78] sm:$0xff]
        %v257 = vld [vmem:[%s1 + $0x80] sm:$0xff]
        %v258 = vld [vmem:[%s1 + $0x88] sm:$0xff]
        %v259 = vld [vmem:[%s1 + $0x90] sm:$0xff]
        %v260 = vld [vmem:[%s1 + $0x98] sm:$0xff]
        %v261 = vld [vmem:[%s1 + $0xa0] sm:$0xff]
        %v262 = vld [vmem:[%s1 + $0xa8] sm:$0xff]
        %v263 = vld [vmem:[%s1 + $0xb0] sm:$0xff]
        %v264 = vld [vmem:[%s1 + $0xb8] sm:$0xff]
        %v265 = vld [vmem:[%s1 + $0xc0] sm:$0xff]
        %v266 = vld [vmem:[%s1 + $0xc8] sm:$0xff]
        %v267 = vld [vmem:[%s1 + $0xd0] sm:$0xff]
        %v268 = vld [vmem:[%s1 + $0xd8] sm:$0xff]
        %v269 = vld [vmem:[%s1 + $0xe0] sm:$0xff]
        %v270 = vld [vmem:[%s1 + $0xe8] sm:$0xff]
        %v271 = vld [vmem:[%s1 + $0xf0] sm:$0xff]
        %v272 = vld [vmem:[%s1 + $0xf8] sm:$0xff]
        %273 = vmatprep.subr.mxu0 0.0
        %274 = vmatpush1.msra.mxu0 %v256
        %275 = vmatprep.subr.mxu0 0.0
        %276 = vmatpush1.msra.mxu0 %v255
        %277 = vmatprep.subr.mxu0 0.0
        %278 = vmatpush1.msra.mxu0 %v254
        %279 = vmatprep.subr.mxu0 0.0
        %280 = vmatpush1.msra.mxu0 %v253
        %281 = vmatprep.subr.mxu0 0.0
        %282 = vmatpush1.msra.mxu0 %v252
        %283 = vmatprep.subr.mxu0 0.0
        %284 = vmatpush1.msra.mxu0 %v251
        %285 = vmatprep.subr.mxu0 0.0
        %286 = vmatpush1.msra.mxu0 %v250
        %287 = vmatprep.subr.mxu0 0.0
        %288 = vmatpush1.msra.mxu0 %v249
        %289 = vmatprep.subr.mxu0 0.0
        %290 = vmatpush1.msra.mxu0 %v248
        %291 = vmatprep.subr.mxu0 0.0
        %292 = vmatpush1.msra.mxu0 %v247
        %293 = vmatprep.subr.mxu0 0.0
        %294 = vmatpush1.msra.mxu0 %v246
        %295 = vmatprep.subr.mxu0 0.0
        %296 = vmatpush1.msra.mxu0 %v245
        %297 = vmatprep.subr.mxu0 0.0
        %298 = vmatpush1.msra.mxu0 %v244
        %299 = vmatprep.subr.mxu0 0.0
        %300 = vmatpush1.msra.mxu0 %v243
        %301 = vmatprep.subr.mxu0 0.0
        %302 = vmatpush1.msra.mxu0 %v242
        %303 = vmatprep.subr.mxu0 0.0
        %304 = vmatpush1.msra.mxu0 %v241
        %305 = vmatprep.subr.mxu0 0.0
        %306 = vmatpush2.msra.mxu0 %v272
        %307 = vmatprep.subr.mxu0 0.0
        %308 = vmatpush2.msra.mxu0 %v271
        %309 = vmatprep.subr.mxu0 0.0
        %310 = vmatpush2.msra.mxu0 %v270
        %311 = vmatprep.subr.mxu0 0.0
        %312 = vmatpush2.msra.mxu0 %v269
        %313 = vmatprep.subr.mxu0 0.0
        %314 = vmatpush2.msra.mxu0 %v268
        %315 = vmatprep.subr.mxu0 0.0
        %316 = vmatpush2.msra.mxu0 %v267
        %317 = vmatprep.subr.mxu0 0.0
        %318 = vmatpush2.msra.mxu0 %v266
        %319 = vmatprep.subr.mxu0 0.0
        %320 = vmatpush2.msra.mxu0 %v265
        %321 = vmatprep.subr.mxu0 0.0
        %322 = vmatpush2.msra.mxu0 %v264
        %323 = vmatprep.subr.mxu0 0.0
        %324 = vmatpush2.msra.mxu0 %v263
        %325 = vmatprep.subr.mxu0 0.0
        %326 = vmatpush2.msra.mxu0 %v262
        %327 = vmatprep.subr.mxu0 0.0
        %328 = vmatpush2.msra.mxu0 %v261
        %329 = vmatprep.subr.mxu0 0.0
        %330 = vmatpush2.msra.mxu0 %v260
        %331 = vmatprep.subr.mxu0 0.0
        %332 = vmatpush2.msra.mxu0 %v259
        %333 = vmatprep.subr.mxu0 0.0
        %334 = vmatpush2.msra.mxu0 %v258
        %335 = vmatprep.subr.mxu0 0.0
        %336 = vmatpush2.msra.mxu0 %v257
        %337 = vmatprep.mubr.f32.mxu0 %v240
        %338 = vmatmul.mubr.f32.gmra.mxu0 %v233
        %v339 = vpop.f32.mrf.mxu0
        %v340 = vadd.f32 0.0, %v339
        %v341 = vpop.f32.mrf.mxu0
        %342 = vdwg.mxu0
        %v343 = vxor.u32 %v340, 2147483648
        %v344 = vmul.f32 %v343, 1.442695
        %v345 = vpow.pop %v344
        %v346 = vadd.f32 %v345, 1.0
        %v347 = vrcp.pop %v346
        %v348 = vmul.f32 1.0, %v347
        %v349 = vld [vmem:[%s2] sm:$0xff]
        %v350 = vld [vmem:[%s2 + $0x8] sm:$0xff]
        %v351 = vld [vmem:[%s2 + $0x10] sm:$0xff]
        %v352 = vld [vmem:[%s2 + $0x18] sm:$0xff]
        %vm353 = vcmask 130048
        %v355 = vsel %vm353, %v348, 0
        %357 = vmatprep.subr.mxu0 0.0
        %358 = vmatpush1.msra.mxu0 0.0
        %359 = vmatprep.subr.mxu0 0.0
        %360 = vmatpush1.msra.mxu0 0.0
        %361 = vmatprep.subr.mxu0 0.0
        %362 = vmatpush1.msra.mxu0 0.0
        %363 = vmatprep.subr.mxu0 0.0
        %364 = vmatpush1.msra.mxu0 0.0
        %365 = vmatprep.subr.mxu0 0.0
        %366 = vmatpush1.msra.mxu0 0.0
        %367 = vmatprep.subr.mxu0 0.0
        %368 = vmatpush1.msra.mxu0 0.0
        %369 = vmatprep.subr.mxu0 0.0
        %370 = vmatpush1.msra.mxu0 0.0
        %371 = vmatprep.subr.mxu0 0.0
        %372 = vmatpush1.msra.mxu0 0.0
        %373 = vmatprep.subr.mxu0 0.0
        %374 = vmatpush1.msra.mxu0 0.0
        %375 = vmatprep.subr.mxu0 0.0
        %376 = vmatpush1.msra.mxu0 0.0
        %377 = vmatprep.subr.mxu0 0.0
        %378 = vmatpush1.msra.mxu0 0.0
        %379 = vmatprep.subr.mxu0 0.0
        %380 = vmatpush1.msra.mxu0 0.0
        %381 = vmatprep.subr.mxu0 0.0
        %382 = vmatpush1.msra.mxu0 0.0
        %383 = vmatprep.subr.mxu0 0.0
        %384 = vmatpush1.msra.mxu0 0.0
        %385 = vmatprep.subr.mxu0 %v352
        %386 = vmatpush1.msra.mxu0 %v351
        %387 = vmatprep.subr.mxu0 %v350
        %388 = vmatpush1.msra.mxu0 %v349
        %389 = vmatprep.subr.mxu0 0.0
        %390 = vmatpush2.msra.mxu0 0.0
        %391 = vmatprep.subr.mxu0 0.0
        %392 = vmatpush2.msra.mxu0 0.0
        %393 = vmatprep.subr.mxu0 0.0
        %394 = vmatpush2.msra.mxu0 0.0
        %395 = vmatprep.subr.mxu0 0.0
        %396 = vmatpush2.msra.mxu0 0.0
        %397 = vmatprep.subr.mxu0 0.0
        %398 = vmatpush2.msra.mxu0 0.0
        %399 = vmatprep.subr.mxu0 0.0
        %400 = vmatpush2.msra.mxu0 0.0
        %401 = vmatprep.subr.mxu0 0.0
        %402 = vmatpush2.msra.mxu0 0.0
        %403 = vmatprep.subr.mxu0 0.0
        %404 = vmatpush2.msra.mxu0 0.0
        %405 = vmatprep.subr.mxu0 0.0
        %406 = vmatpush2.msra.mxu0 0.0
        %407 = vmatprep.subr.mxu0 0.0
        %408 = vmatpush2.msra.mxu0 0.0
        %409 = vmatprep.subr.mxu0 0.0
        %410 = vmatpush2.msra.mxu0 0.0
        %411 = vmatprep.subr.mxu0 0.0
        %412 = vmatpush2.msra.mxu0 0.0
        %413 = vmatprep.subr.mxu0 0.0
        %414 = vmatpush2.msra.mxu0 0.0
        %415 = vmatprep.subr.mxu0 0.0
        %416 = vmatpush2.msra.mxu0 0.0
        %417 = vmatprep.subr.mxu0 0.0
        %418 = vmatpush2.msra.mxu0 0.0
        %419 = vmatprep.subr.mxu0 0.0
        %420 = vmatpush2.msra.mxu0 0.0
        %421 = vmatprep.mubr.f32.mxu0 0.0
        %422 = vmatmul.mubr.f32.gmra.mxu0 %v355
        %v423 = vpop.f32.mrf.mxu0
        %v424 = vadd.f32 0.0, %v423
        %v425 = vpop.f32.mrf.mxu0
        %v426 = vadd.f32 0.0, %v425
        %427 = vdwg.mxu0
        %v428 = vld [vmem:[%s3] sm:$0xff]
        %v430 = vsel %vm353, %v428, 0
        %432 = vmatprep.subr.mxu0 0.0
        %433 = vmatpush1.msra.mxu0 0.0
        %434 = vmatprep.subr.mxu0 0.0
        %435 = vmatpush1.msra.mxu0 0.0
        %436 = vmatprep.subr.mxu0 0.0
        %437 = vmatpush1.msra.mxu0 0.0
        %438 = vmatprep.subr.mxu0 0.0
        %439 = vmatpush1.msra.mxu0 0.0
        %440 = vmatprep.subr.mxu0 0.0
        %441 = vmatpush1.msra.mxu0 0.0
        %442 = vmatprep.subr.mxu0 0.0
        %443 = vmatpush1.msra.mxu0 0.0
        %444 = vmatprep.subr.mxu0 0.0
        %445 = vmatpush1.msra.mxu0 0.0
        %446 = vmatprep.subr.mxu0 0.0
        %447 = vmatpush1.msra.mxu0 0.0
        %448 = vmatprep.subr.mxu0 0.0
        %449 = vmatpush1.msra.mxu0 0.0
        %450 = vmatprep.subr.mxu0 0.0
        %451 = vmatpush1.msra.mxu0 0.0
        %452 = vmatprep.subr.mxu0 0.0
        %453 = vmatpush1.msra.mxu0 0.0
        %454 = vmatprep.subr.mxu0 0.0
        %455 = vmatpush1.msra.mxu0 0.0
        %456 = vmatprep.subr.mxu0 0.0
        %457 = vmatpush1.msra.mxu0 0.0
        %458 = vmatprep.subr.mxu0 0.0
        %459 = vmatpush1.msra.mxu0 0.0
        %460 = vmatprep.subr.mxu0 %v226
        %461 = vmatpush1.msra.mxu0 %v225
        %462 = vmatprep.subr.mxu0 %v224
        %463 = vmatpush1.msra.mxu0 %v223
        %464 = vmatprep.subr.mxu0 0.0
        %465 = vmatpush2.msra.mxu0 0.0
        %466 = vmatprep.subr.mxu0 0.0
        %467 = vmatpush2.msra.mxu0 0.0
        %468 = vmatprep.subr.mxu0 0.0
        %469 = vmatpush2.msra.mxu0 0.0
        %470 = vmatprep.subr.mxu0 0.0
        %471 = vmatpush2.msra.mxu0 0.0
        %472 = vmatprep.subr.mxu0 0.0
        %473 = vmatpush2.msra.mxu0 0.0
        %474 = vmatprep.subr.mxu0 0.0
        %475 = vmatpush2.msra.mxu0 0.0
        %476 = vmatprep.subr.mxu0 0.0
        %477 = vmatpush2.msra.mxu0 0.0
        %478 = vmatprep.subr.mxu0 0.0
        %479 = vmatpush2.msra.mxu0 0.0
        %480 = vmatprep.subr.mxu0 0.0
        %481 = vmatpush2.msra.mxu0 0.0
        %482 = vmatprep.subr.mxu0 0.0
        %483 = vmatpush2.msra.mxu0 0.0
        %484 = vmatprep.subr.mxu0 0.0
        %485 = vmatpush2.msra.mxu0 0.0
        %486 = vmatprep.subr.mxu0 0.0
        %487 = vmatpush2.msra.mxu0 0.0
        %488 = vmatprep.subr.mxu0 0.0
        %489 = vmatpush2.msra.mxu0 0.0
        %490 = vmatprep.subr.mxu0 0.0
        %491 = vmatpush2.msra.mxu0 0.0
        %492 = vmatprep.subr.mxu0 0.0
        %493 = vmatpush2.msra.mxu0 0.0
        %494 = vmatprep.subr.mxu0 0.0
        %495 = vmatpush2.msra.mxu0 0.0
        %496 = vmatprep.mubr.f32.mxu0 0.0
        %497 = vmatmul.mubr.f32.gmra.mxu0 %v430
        %v498 = vpop.f32.mrf.mxu0
        %v499 = vadd.f32 0.0, %v498
        %v500 = vpop.f32.mrf.mxu0
        %v501 = vadd.f32 0.0, %v500
        %502 = vdwg.mxu0
        %v503 = vlaneseq
        %v504 = vshrl.u32 %v503, 7
        %v505 = vsub.s32 0, %v504
        %v506 = vrot.slane %v424, %v505
        %v507 = vlaneseq
        %v508 = vshrl.u32 %v507, 7
        %v509 = vsub.s32 0, %v508
        %v510 = vrot.slane %v426, %v509
        %v511 = vmul.f32 %v499, %v506
        %v512 = vmul.f32 %v501, %v510
        %v513 = vld [vmem:[%s4] sm:$0xff]
        %515 = vset.pattern.permute.xlu0 0
        %516 = vperm.xlu0 %515, %v513
        %v517 = vpop.permute.xlu0 %516
        %v519 = vadd.f32 %v511, %v517
        %v520 = vadd.f32 %v512, %v517
        %521 = vst [vmem:[%s217] sm:$0xff] %v519
        %522 = vst [vmem:[%s217 + $0x8] sm:$0xff] %v520
        %s523 = sand.u32 %s137, 1
        %s524 = scalar_lea.sflag [#allocation3], %s523
        %s525 = sand.u32 %s137, 1
        %s526 = smul.addr %s525, 16
        %s527 = scalar_lea.vmem [#allocation2], %s526
        // Predicated region
        $region41: #{tpu_custom_call.1} parent=39 // pred_check
          %p528 = pneg %p147
        $region42: #{tpu_custom_call.1} parent=39 // pred_check_branch
          %530 = sbr.rel (%p528) target = $region44
        $region43: #{tpu_custom_call.1} parent=39 // pred_region
          %s532 = ssub.s32 256, 256
          %533 = vsyncadd %s524, %s532
          %s534 = smul.addr %s19, 2
          %s535 = smul.addr %s534, 128
          %s536 = scalar_lea.hbm %s5, %s535
          %s538 = sshll.u32 %s527, 4
          %s539 = int_to_ptr.vmem [resolvable:$true] %s538
          %541 = dma.vmem_to_hbm [thread:$0]  %s539, 256, %s536, %s524
        $region44: #{tpu_custom_call.1} parent=39 // pred_fallthru
          _
      $region40: #{tpu_custom_call.1} parent=5 // pred_fallthru
        _
      %p542 = scmp.le.s32.totalorder 2, %s14
      // Predicated region
      $region45: #{tpu_custom_call.1} parent=5 // pred_check
        %p543 = pneg %p542
      $region46: #{tpu_custom_call.1} parent=5 // pred_check_branch
        %545 = sbr.rel (%p543) target = $region48
      $region47: #{tpu_custom_call.1} parent=5 // pred_region
        %s546 = ssub.s32 %s14, 2
        // Predicated region
        $region49: #{tpu_custom_call.1} parent=47 // pred_check
          %p547 = pneg %p153
        $region50: #{tpu_custom_call.1} parent=47 // pred_check_branch
          %549 = sbr.rel (%p547) target = $region52
        $region51: #{tpu_custom_call.1} parent=47 // pred_region
          %s550 = sand.u32 %s138, 1
          %s551 = scalar_lea.sflag [#allocation3], %s550
          %s552 = sand.u32 %s138, 1
          %s553 = smul.addr %s552, 16
          %s554 = scalar_lea.vmem [#allocation2], %s553
          %555 = dma.done %s551, 256
        $region52: #{tpu_custom_call.1} parent=47 // pred_fallthru
          _
      $region48: #{tpu_custom_call.1} parent=5 // pred_fallthru
        _
    $region6: #{tpu_custom_call.1} parent=1 // loop_footer
      %s18 = sadd.s32 1, %s14
    $region7: #{tpu_custom_call.1} parent=1 // loop_footer_branch
      %13 = sbr.rel target = $region3
    $region8: #{tpu_custom_call.1} parent=1 // loop_exit
      _
    %556 = vsyncpa [#allocation3], 1
    %s557 = scalar_lea.sflag [#allocation3], 1
    %558 = vsyncpa %s557, 1

</llo_original>
